<compile_context>
chip_gen: v6e
topology: v6e:2x2x1
jax: 0.10.0
libtpu: 0.0.40
codegen_flags: <defaults>
</compile_context>

<pallas_src>
import math

import numpy as np
import jax
import jax.numpy as jnp
from jax.experimental import pallas as pl
from jax.experimental.pallas import tpu as pltpu

# ---------------- model sizes (consistent with the module) ----------------
B = 2            # batch
S = 8            # sequence length
D = 32           # hidden_dim
H = 4            # num_heads
HD = D // H      # head dim
MLP_DIM = 64     # mlp_dim
EPS = 1e-6       # LayerNorm eps (partial(nn.LayerNorm, eps=1e-6))
BS = B * S       # rows fed to every dense matmul (16)
GW = H * BS      # wide attention width: columns indexed (head, batch, key) (64)
NEG = -1e30      # additive mask value for cross-batch score entries

# ---------------- packed-slab row layout (all offsets multiples of 8) ----------------
R_WQKV = 0                   # (D, 3D)      fused QKV weight, Q cols pre-scaled by 1/sqrt(HD)
R_WO   = R_WQKV + D          # (D, D)       attention output projection
R_W1   = R_WO + D            # (D, MLP_DIM) MLP first linear
R_W2   = R_W1 + D            # (MLP_DIM, D) MLP second linear
R_SEG  = R_W2 + MLP_DIM      # (GW, GW)     block-diagonal ones -> per-head softmax sums
R_HM   = R_SEG + GW          # (GW, D)      head mask for replicated K/V rows
R_BB   = R_HM + GW           # (BS, GW)     additive cross-batch mask (0 / -1e30)
R_SV   = R_BB + BS           # (8, 128)     packed small vectors (LN params, biases)
R_TOT  = R_SV + 8            # 312 rows total


# ---------------- Pallas kernel: whole (B*S, D) problem in one invocation ----------------
def encoder_block_kernel(x_ref, slab_ref, out_ref):
    x = x_ref[...]                                       # (BS, D)

    # ---- one packed slab: weights + layout constants + small vectors (one DMA) ----
    wqkv = slab_ref[R_WQKV:R_WQKV + D, 0:3 * D]          # (D, 3D)
    wo   = slab_ref[R_WO:R_WO + D, 0:D]                  # (D, D)
    w1   = slab_ref[R_W1:R_W1 + D, 0:MLP_DIM]            # (D, MLP_DIM)
    w2   = slab_ref[R_W2:R_W2 + MLP_DIM, 0:D]            # (MLP_DIM, D)
    seg  = slab_ref[R_SEG:R_SEG + GW, 0:GW]              # (GW, GW) block-diag ones
    hm   = slab_ref[R_HM:R_HM + GW, 0:D]                 # (GW, D)  head mask
    bb   = slab_ref[R_BB:R_BB + BS, 0:GW]                # (BS, GW) cross-batch bias
    sv   = slab_ref[R_SV:R_SV + 8, :]                    # (8, 128) small vectors

    ln1_w = sv[0:1, 0:D]
    ln1_b = sv[1:2, 0:D]
    ln2_w = sv[2:3, 0:D]
    ln2_b = sv[3:4, 0:D]
    bqkv  = sv[4:5, 0:3 * D]        # Q part already scaled by 1/sqrt(HD)
    bo    = sv[5:6, 0:D]
    b1    = sv[6:7, 0:MLP_DIM]
    b2    = sv[7:8, 0:D]

    # ---- LayerNorm 1 (one-pass variance: the two reductions are independent) ----
    mu = jnp.mean(x, axis=-1, keepdims=True)
    ms = jnp.mean(x * x, axis=-1, keepdims=True)
    xn = (x - mu) * jax.lax.rsqrt(ms - mu * mu + EPS)
    xn = xn * ln1_w + ln1_b

    # ---- fused QKV projection: one MXU dot (attention scale folded into Q cols) ----
    qkv = jnp.dot(xn, wqkv, preferred_element_type=jnp.float32) + bqkv   # (BS, 3D)
    q = qkv[:, 0:D]
    k = qkv[:, D:2 * D]
    v = qkv[:, 2 * D:3 * D]

    # ---- head-block replication: sublane copies + one VPU mask mul, no transposes ----
    # row p = h*BS + j  (j = b*S + key);  hm zeroes features outside head h.
    k_rep = jnp.concatenate([k] * H, axis=0) * hm        # (GW, D)
    v_rep = jnp.concatenate([v] * H, axis=0) * hm        # (GW, D)

    # ---- attention: two lane-dense 2-D matmuls + one segment-sum matmul ----
    # scores[r, h*BS + j] = sum_{d in head h} q[r, d] * k[j, d]
    scores = jax.lax.dot_general(q, k_rep, (((1,), (1,)), ((), ())),
                                 preferred_element_type=jnp.float32)    # (BS, GW)
    scores = scores + bb                                  # cross-batch cols -> -1e30

    # row max >= every per-head max -> exp stays in range; masked cols underflow to 0
    m = jnp.max(scores, axis=-1, keepdims=True)
    p = jnp.exp(scores - m)
    denom = jnp.dot(p, seg, preferred_element_type=jnp.float32)  # per-head sums, lane-broadcast
    probs = p / denom                                     # exact reciprocal/division

    ctx = jnp.dot(probs, v_rep, preferred_element_type=jnp.float32)      # (BS, D)
    attn = jnp.dot(ctx, wo, preferred_element_type=jnp.float32) + bo

    # residual 1 (dropout == identity in eval mode)
    x2 = attn + x

    # ---- LayerNorm 2 ----
    mu2 = jnp.mean(x2, axis=-1, keepdims=True)
    ms2 = jnp.mean(x2 * x2, axis=-1, keepdims=True)
    yn = (x2 - mu2) * jax.lax.rsqrt(ms2 - mu2 * mu2 + EPS)
    yn = yn * ln2_w + ln2_b

    # ---- MLP: Linear -> GELU(exact erf) -> Linear ----
    h1 = jnp.dot(yn, w1, preferred_element_type=jnp.float32) + b1
    h1 = 0.5 * h1 * (1.0 + jax.lax.erf(h1 * (1.0 / math.sqrt(2.0))))
    y = jnp.dot(h1, w2, preferred_element_type=jnp.float32) + b2

    # residual 2
    out_ref[...] = x2 + y


def encoder_block(x, params):
    """x: (B, S, D) float32.  params: {'slab': (R_TOT, 128) f32 packed weights}."""
    x2d = x.reshape(BS, D)
    vmem = pl.BlockSpec(memory_space=pltpu.MemorySpace.VMEM)
    out = pl.pallas_call(
        encoder_block_kernel,
        out_shape=jax.ShapeDtypeStruct((BS, D), jnp.float32),
        in_specs=[vmem, vmem],
        out_specs=vmem,
    )(x2d, params["slab"])
    return out.reshape(B, S, D)


# ---------------- deterministic parameter construction + host-side packing ----------------
def make_params(key):
    ks = jax.random.split(key, 8)

    def xavier(k, shape):
        fan_out, fan_in = shape
        bound = math.sqrt(6.0 / (fan_in + fan_out))
        return jax.random.uniform(k, shape, jnp.float32, -bound, bound)

    # PyTorch-native parameter shapes (y = x @ W.T + b)
    raw = dict(
        ln1_w=jnp.ones((D,), jnp.float32), ln1_b=jnp.zeros((D,), jnp.float32),
        in_proj_w=xavier(ks[0], (3 * D, D)),
        in_proj_b=0.01 * jax.random.normal(ks[1], (3 * D,), jnp.float32),
        out_proj_w=xavier(ks[2], (D, D)),
        out_proj_b=0.01 * jax.random.normal(ks[3], (D,), jnp.float32),
        ln2_w=jnp.ones((D,), jnp.float32), ln2_b=jnp.zeros((D,), jnp.float32),
        lin1_w=xavier(ks[4], (MLP_DIM, D)),
        lin1_b=1e-6 * jax.random.normal(ks[5], (MLP_DIM,), jnp.float32),
        lin2_w=xavier(ks[6], (D, MLP_DIM)),
        lin2_b=1e-6 * jax.random.normal(ks[7], (D,), jnp.float32),
    )

    # ---- kernel-side fusion / packing (host-side, one-time) ----
    scale = 1.0 / math.sqrt(HD)
    wq = np.asarray(raw["in_proj_w"][:D]).T * scale        # fold attention scale into Q
    wk = np.asarray(raw["in_proj_w"][D:2 * D]).T
    wv = np.asarray(raw["in_proj_w"][2 * D:]).T
    wqkv = np.concatenate([wq, wk, wv], axis=1)            # (D, 3D)
    bqkv = np.concatenate([np.asarray(raw["in_proj_b"][:D]) * scale,
                           np.asarray(raw["in_proj_b"][D:2 * D]),
                           np.asarray(raw["in_proj_b"][2 * D:])])

    # attention layout constants: head mask, per-head segment-sum operator, batch bias
    p_idx = np.arange(GW)
    hmask = (p_idx[:, None] // BS == np.arange(D)[None, :] // HD).astype(np.float32)
    segsum = (p_idx[:, None] // BS == p_idx[None, :] // BS).astype(np.float32)
    bbias = np.where(np.arange(BS)[:, None] // S == (p_idx[None, :] % BS) // S,
                     0.0, NEG).astype(np.float32)

    # one (R_TOT, 128) slab holding every weight / constant / vector -> single DMA
    slab = np.zeros((R_TOT, 128), np.float32)
    slab[R_WQKV:R_WQKV + D, 0:3 * D] = wqkv
    slab[R_WO:R_WO + D, 0:D] = np.asarray(raw["out_proj_w"]).T
    slab[R_W1:R_W1 + D, 0:MLP_DIM] = np.asarray(raw["lin1_w"]).T
    slab[R_W2:R_W2 + MLP_DIM, 0:D] = np.asarray(raw["lin2_w"]).T
    slab[R_SEG:R_SEG + GW, 0:GW] = segsum
    slab[R_HM:R_HM + GW, 0:D] = hmask
    slab[R_BB:R_BB + BS, 0:GW] = bbias
    slab[R_SV + 0, 0:D] = np.asarray(raw["ln1_w"])
    slab[R_SV + 1, 0:D] = np.asarray(raw["ln1_b"])
    slab[R_SV + 2, 0:D] = np.asarray(raw["ln2_w"])
    slab[R_SV + 3, 0:D] = np.asarray(raw["ln2_b"])
    slab[R_SV + 4, 0:3 * D] = bqkv
    slab[R_SV + 5, 0:D] = np.asarray(raw["out_proj_b"])
    slab[R_SV + 6, 0:MLP_DIM] = np.asarray(raw["lin1_b"])
    slab[R_SV + 7, 0:D] = np.asarray(raw["lin2_b"])

    return raw, dict(slab=jnp.asarray(slab))


# ---------------- pure-JAX reference (PyTorch semantics, f32 matmuls) ----------------
def reference(x, raw):
    hp = jax.lax.Precision.HIGHEST

    def ln(z, w, b):
        mu = jnp.mean(z, axis=-1, keepdims=True)
        var = jnp.mean((z - mu) ** 2, axis=-1, keepdims=True)
        return (z - mu) / jnp.sqrt(var + EPS) * w + b

    xn = ln(x, raw["ln1_w"], raw["ln1_b"])
    q = jnp.dot(xn, raw["in_proj_w"][:D].T, precision=hp) + raw["in_proj_b"][:D]
    k = jnp.dot(xn, raw["in_proj_w"][D:2 * D].T, precision=hp) + raw["in_proj_b"][D:2 * D]
    v = jnp.dot(xn, raw["in_proj_w"][2 * D:].T, precision=hp) + raw["in_proj_b"][2 * D:]
    q = q.reshape(B, S, H, HD).transpose(0, 2, 1, 3)
    k = k.reshape(B, S, H, HD).transpose(0, 2, 1, 3)
    v = v.reshape(B, S, H, HD).transpose(0, 2, 1, 3)
    scores = jnp.einsum("bhqd,bhkd->bhqk", q, k, precision=hp) / math.sqrt(HD)
    a = jax.nn.softmax(scores, axis=-1)
    o = jnp.einsum("bhqk,bhkd->bhqd", a, v, precision=hp)
    o = o.transpose(0, 2, 1, 3).reshape(B, S, D)
    o = jnp.dot(o, raw["out_proj_w"].T, precision=hp) + raw["out_proj_b"]
    x2 = o + x
    yn = ln(x2, raw["ln2_w"], raw["ln2_b"])
    h1 = jnp.dot(yn, raw["lin1_w"].T, precision=hp) + raw["lin1_b"]
    h1 = 0.5 * h1 * (1.0 + jax.lax.erf(h1 / math.sqrt(2.0)))
    y = jnp.dot(h1, raw["lin2_w"].T, precision=hp) + raw["lin2_b"]
    return x2 + y


if __name__ == "__main__":
    key = jax.random.PRNGKey(0)
    kx, kp = jax.random.split(key)
    x = jax.random.normal(kx, (B, S, D), jnp.float32)
    raw, params = make_params(kp)

    out = jax.block_until_ready(encoder_block(x, params))
    ref = reference(x, raw)

    assert out.shape == (B, S, D)
    # exact-reciprocal softmax + f32 matmuls -> tight tolerance (was 2e-2)
    assert jnp.allclose(out, ref, atol=1e-4, rtol=1e-4), "mismatch vs reference"

    print("KERNEL_OK")
</pallas_src>

<mosaic_0001>
module attributes {stable_mosaic.version = 11 : i64} {
  func.func @encoder_block_kernel(%arg0: memref<16x32xf32, #tpu.memory_space<vmem>>, %arg1: memref<312x128xf32, #tpu.memory_space<vmem>>, %arg2: memref<16x32xf32, #tpu.memory_space<vmem>>) attributes {dimension_semantics = [], scalar_prefetch = 0 : i64, scratch_operands = 0 : i64, tpu.core_type = #tpu.core_type<tc>} {
    %c0 = arith.constant 0 : index
    %c0_0 = arith.constant 0 : index
    %0 = vector.load %arg0[%c0, %c0_0] : memref<16x32xf32, #tpu.memory_space<vmem>>, vector<16x32xf32>
    %c0_1 = arith.constant 0 : index
    %c0_2 = arith.constant 0 : index
    %1 = vector.load %arg1[%c0_1, %c0_2] : memref<312x128xf32, #tpu.memory_space<vmem>>, vector<32x96xf32>
    %c32 = arith.constant 32 : index
    %c0_3 = arith.constant 0 : index
    %2 = vector.load %arg1[%c32, %c0_3] : memref<312x128xf32, #tpu.memory_space<vmem>>, vector<32x32xf32>
    %c64 = arith.constant 64 : index
    %c0_4 = arith.constant 0 : index
    %3 = vector.load %arg1[%c64, %c0_4] : memref<312x128xf32, #tpu.memory_space<vmem>>, vector<32x64xf32>
    %c96 = arith.constant 96 : index
    %c0_5 = arith.constant 0 : index
    %4 = vector.load %arg1[%c96, %c0_5] : memref<312x128xf32, #tpu.memory_space<vmem>>, vector<64x32xf32>
    %c160 = arith.constant 160 : index
    %c0_6 = arith.constant 0 : index
    %5 = vector.load %arg1[%c160, %c0_6] : memref<312x128xf32, #tpu.memory_space<vmem>>, vector<64x64xf32>
    %c224 = arith.constant 224 : index
    %c0_7 = arith.constant 0 : index
    %6 = vector.load %arg1[%c224, %c0_7] : memref<312x128xf32, #tpu.memory_space<vmem>>, vector<64x32xf32>
    %c288 = arith.constant 288 : index
    %c0_8 = arith.constant 0 : index
    %7 = vector.load %arg1[%c288, %c0_8] : memref<312x128xf32, #tpu.memory_space<vmem>>, vector<16x64xf32>
    %c304 = arith.constant 304 : index
    %c0_9 = arith.constant 0 : index
    %8 = vector.load %arg1[%c304, %c0_9] : memref<312x128xf32, #tpu.memory_space<vmem>>, vector<8x128xf32>
    %9 = vector.extract_strided_slice %8 {offsets = [0, 0], sizes = [1, 32], strides = [1, 1]} : vector<8x128xf32> to vector<1x32xf32>
    %10 = vector.extract_strided_slice %8 {offsets = [1, 0], sizes = [1, 32], strides = [1, 1]} : vector<8x128xf32> to vector<1x32xf32>
    %11 = vector.extract_strided_slice %8 {offsets = [2, 0], sizes = [1, 32], strides = [1, 1]} : vector<8x128xf32> to vector<1x32xf32>
    %12 = vector.extract_strided_slice %8 {offsets = [3, 0], sizes = [1, 32], strides = [1, 1]} : vector<8x128xf32> to vector<1x32xf32>
    %13 = vector.extract_strided_slice %8 {offsets = [4, 0], sizes = [1, 96], strides = [1, 1]} : vector<8x128xf32> to vector<1x96xf32>
    %14 = vector.extract_strided_slice %8 {offsets = [5, 0], sizes = [1, 32], strides = [1, 1]} : vector<8x128xf32> to vector<1x32xf32>
    %15 = vector.extract_strided_slice %8 {offsets = [6, 0], sizes = [1, 64], strides = [1, 1]} : vector<8x128xf32> to vector<1x64xf32>
    %16 = vector.extract_strided_slice %8 {offsets = [7, 0], sizes = [1, 32], strides = [1, 1]} : vector<8x128xf32> to vector<1x32xf32>
    %cst = arith.constant dense<0.000000e+00> : vector<16xf32>
    %17 = vector.multi_reduction <add>, %0, %cst [1] : vector<16x32xf32> to vector<16xf32>
    %18 = vector.shape_cast %17 : vector<16xf32> to vector<16x1xf32>
    %cst_10 = arith.constant 3.200000e+01 : f32
    %19 = vector.broadcast %cst_10 : f32 to vector<16x1xf32>
    %20 = arith.divf %18, %19 : vector<16x1xf32>
    %21 = arith.mulf %0, %0 : vector<16x32xf32>
    %cst_11 = arith.constant dense<0.000000e+00> : vector<16xf32>
    %22 = vector.multi_reduction <add>, %21, %cst_11 [1] : vector<16x32xf32> to vector<16xf32>
    %23 = vector.shape_cast %22 : vector<16xf32> to vector<16x1xf32>
    %cst_12 = arith.constant 3.200000e+01 : f32
    %24 = vector.broadcast %cst_12 : f32 to vector<16x1xf32>
    %25 = arith.divf %23, %24 : vector<16x1xf32>
    %26 = vector.broadcast %20 : vector<16x1xf32> to vector<16x32xf32>
    %27 = arith.subf %0, %26 : vector<16x32xf32>
    %28 = arith.mulf %20, %20 : vector<16x1xf32>
    %29 = arith.subf %25, %28 : vector<16x1xf32>
    %cst_13 = arith.constant 9.99999997E-7 : f32
    %30 = vector.broadcast %cst_13 : f32 to vector<16x1xf32>
    %31 = arith.addf %29, %30 : vector<16x1xf32>
    %32 = math.rsqrt %31 : vector<16x1xf32>
    %33 = vector.broadcast %32 : vector<16x1xf32> to vector<16x32xf32>
    %34 = arith.mulf %27, %33 : vector<16x32xf32>
    %35 = vector.broadcast %9 : vector<1x32xf32> to vector<16x32xf32>
    %36 = arith.mulf %34, %35 : vector<16x32xf32>
    %37 = vector.broadcast %10 : vector<1x32xf32> to vector<16x32xf32>
    %38 = arith.addf %36, %37 : vector<16x32xf32>
    %cst_14 = arith.constant dense<0.000000e+00> : vector<16x96xf32>
    %39 = tpu.matmul %38, %1, %cst_14 {dimension_numbers = #tpu.dot_dimension_numbers<[1], [0], [0], [1], [0, 0, 1, 1], [], []>} : vector<16x32xf32>, vector<32x96xf32>, vector<16x96xf32> -> vector<16x96xf32>
    %40 = vector.broadcast %13 : vector<1x96xf32> to vector<16x96xf32>
    %41 = arith.addf %39, %40 : vector<16x96xf32>
    %42 = vector.extract_strided_slice %41 {offsets = [0, 0], sizes = [16, 32], strides = [1, 1]} : vector<16x96xf32> to vector<16x32xf32>
    %43 = vector.extract_strided_slice %41 {offsets = [0, 32], sizes = [16, 32], strides = [1, 1]} : vector<16x96xf32> to vector<16x32xf32>
    %44 = vector.extract_strided_slice %41 {offsets = [0, 64], sizes = [16, 32], strides = [1, 1]} : vector<16x96xf32> to vector<16x32xf32>
    %45 = tpu.concatenate %43, %43, %43, %43 in 0 : vector<16x32xf32>, vector<16x32xf32>, vector<16x32xf32>, vector<16x32xf32> -> vector<64x32xf32>
    %46 = arith.mulf %45, %6 : vector<64x32xf32>
    %47 = tpu.concatenate %44, %44, %44, %44 in 0 : vector<16x32xf32>, vector<16x32xf32>, vector<16x32xf32>, vector<16x32xf32> -> vector<64x32xf32>
    %48 = arith.mulf %47, %6 : vector<64x32xf32>
    %cst_15 = arith.constant dense<0.000000e+00> : vector<16x64xf32>
    %49 = tpu.matmul %42, %46, %cst_15 {dimension_numbers = #tpu.dot_dimension_numbers<[1], [1], [0], [0], [0, 0, 1, 0], [], []>} : vector<16x32xf32>, vector<64x32xf32>, vector<16x64xf32> -> vector<16x64xf32>
    %50 = arith.addf %49, %7 : vector<16x64xf32>
    %cst_16 = arith.constant dense<0xFF800000> : vector<16xf32>
    %51 = vector.multi_reduction <maximumf>, %50, %cst_16 [1] : vector<16x64xf32> to vector<16xf32>
    %52 = vector.shape_cast %51 : vector<16xf32> to vector<16x1xf32>
    %53 = vector.broadcast %52 : vector<16x1xf32> to vector<16x64xf32>
    %54 = arith.subf %50, %53 : vector<16x64xf32>
    %55 = math.exp %54 : vector<16x64xf32>
    %cst_17 = arith.constant dense<0.000000e+00> : vector<16x64xf32>
    %56 = tpu.matmul %55, %5, %cst_17 {dimension_numbers = #tpu.dot_dimension_numbers<[1], [0], [0], [1], [0, 0, 1, 1], [], []>} : vector<16x64xf32>, vector<64x64xf32>, vector<16x64xf32> -> vector<16x64xf32>
    %57 = arith.divf %55, %56 : vector<16x64xf32>
    %cst_18 = arith.constant dense<0.000000e+00> : vector<16x32xf32>
    %58 = tpu.matmul %57, %48, %cst_18 {dimension_numbers = #tpu.dot_dimension_numbers<[1], [0], [0], [1], [0, 0, 1, 1], [], []>} : vector<16x64xf32>, vector<64x32xf32>, vector<16x32xf32> -> vector<16x32xf32>
    %cst_19 = arith.constant dense<0.000000e+00> : vector<16x32xf32>
    %59 = tpu.matmul %58, %2, %cst_19 {dimension_numbers = #tpu.dot_dimension_numbers<[1], [0], [0], [1], [0, 0, 1, 1], [], []>} : vector<16x32xf32>, vector<32x32xf32>, vector<16x32xf32> -> vector<16x32xf32>
    %60 = vector.broadcast %14 : vector<1x32xf32> to vector<16x32xf32>
    %61 = arith.addf %59, %60 : vector<16x32xf32>
    %62 = arith.addf %61, %0 : vector<16x32xf32>
    %cst_20 = arith.constant dense<0.000000e+00> : vector<16xf32>
    %63 = vector.multi_reduction <add>, %62, %cst_20 [1] : vector<16x32xf32> to vector<16xf32>
    %64 = vector.shape_cast %63 : vector<16xf32> to vector<16x1xf32>
    %cst_21 = arith.constant 3.200000e+01 : f32
    %65 = vector.broadcast %cst_21 : f32 to vector<16x1xf32>
    %66 = arith.divf %64, %65 : vector<16x1xf32>
    %67 = arith.mulf %62, %62 : vector<16x32xf32>
    %cst_22 = arith.constant dense<0.000000e+00> : vector<16xf32>
    %68 = vector.multi_reduction <add>, %67, %cst_22 [1] : vector<16x32xf32> to vector<16xf32>
    %69 = vector.shape_cast %68 : vector<16xf32> to vector<16x1xf32>
    %cst_23 = arith.constant 3.200000e+01 : f32
    %70 = vector.broadcast %cst_23 : f32 to vector<16x1xf32>
    %71 = arith.divf %69, %70 : vector<16x1xf32>
    %72 = vector.broadcast %66 : vector<16x1xf32> to vector<16x32xf32>
    %73 = arith.subf %62, %72 : vector<16x32xf32>
    %74 = arith.mulf %66, %66 : vector<16x1xf32>
    %75 = arith.subf %71, %74 : vector<16x1xf32>
    %cst_24 = arith.constant 9.99999997E-7 : f32
    %76 = vector.broadcast %cst_24 : f32 to vector<16x1xf32>
    %77 = arith.addf %75, %76 : vector<16x1xf32>
    %78 = math.rsqrt %77 : vector<16x1xf32>
    %79 = vector.broadcast %78 : vector<16x1xf32> to vector<16x32xf32>
    %80 = arith.mulf %73, %79 : vector<16x32xf32>
    %81 = vector.broadcast %11 : vector<1x32xf32> to vector<16x32xf32>
    %82 = arith.mulf %80, %81 : vector<16x32xf32>
    %83 = vector.broadcast %12 : vector<1x32xf32> to vector<16x32xf32>
    %84 = arith.addf %82, %83 : vector<16x32xf32>
    %cst_25 = arith.constant dense<0.000000e+00> : vector<16x64xf32>
    %85 = tpu.matmul %84, %3, %cst_25 {dimension_numbers = #tpu.dot_dimension_numbers<[1], [0], [0], [1], [0, 0, 1, 1], [], []>} : vector<16x32xf32>, vector<32x64xf32>, vector<16x64xf32> -> vector<16x64xf32>
    %86 = vector.broadcast %15 : vector<1x64xf32> to vector<16x64xf32>
    %87 = arith.addf %85, %86 : vector<16x64xf32>
    %cst_26 = arith.constant 5.000000e-01 : f32
    %88 = vector.broadcast %cst_26 : f32 to vector<16x64xf32>
    %89 = arith.mulf %88, %87 : vector<16x64xf32>
    %cst_27 = arith.constant 0.707106769 : f32
    %90 = vector.broadcast %cst_27 : f32 to vector<16x64xf32>
    %91 = arith.mulf %87, %90 : vector<16x64xf32>
    %92 = math.erf %91 : vector<16x64xf32>
    %cst_28 = arith.constant 1.000000e+00 : f32
    %93 = vector.broadcast %cst_28 : f32 to vector<16x64xf32>
    %94 = arith.addf %93, %92 : vector<16x64xf32>
    %95 = arith.mulf %89, %94 : vector<16x64xf32>
    %cst_29 = arith.constant dense<0.000000e+00> : vector<16x32xf32>
    %96 = tpu.matmul %95, %4, %cst_29 {dimension_numbers = #tpu.dot_dimension_numbers<[1], [0], [0], [1], [0, 0, 1, 1], [], []>} : vector<16x64xf32>, vector<64x32xf32>, vector<16x32xf32> -> vector<16x32xf32>
    %97 = vector.broadcast %16 : vector<1x32xf32> to vector<16x32xf32>
    %98 = arith.addf %96, %97 : vector<16x32xf32>
    %99 = arith.addf %62, %98 : vector<16x32xf32>
    %c0_30 = arith.constant 0 : index
    %c0_31 = arith.constant 0 : index
    %100 = vector.load %arg2[%c0_30, %c0_31] : memref<16x32xf32, #tpu.memory_space<vmem>>, vector<16x32xf32>
    tpu.vector_store %arg2[%c0_30, %c0_31], %99 {strides = array<i32>} : memref<16x32xf32, #tpu.memory_space<vmem>>, vector<16x32xf32>,
    return
  }
}

</mosaic_0001>

<llo_original>
// kernel: tpu_custom_call.1
$region0: #{tpu_custom_call.1}
  #allocation0 [shape = 'u32[]', space=smem, size = 0x4, offset = 0x4, fixed_abs, tag = 'smem constant byte address 0x4 - core index']
  #allocation1 [shape = 'u32[144,128]{1,0:T(1,128)}', space=vmem, size = 0x12000, scoped, tag = 'internal scratch']
  %s0 = inlined_call_operand.hbm [shape: f32[16,32], index: 0, kind: input, shape index: {}]
  %s1 = inlined_call_operand.hbm [shape: f32[312,128], index: 1, kind: input, shape index: {}]
  %s2 = inlined_call_operand.hbm [shape: f32[16,32], index: 2, kind: output, shape index: {}]
  %s3 = sld [smem:[#allocation0]]
  $region26: #{tpu_custom_call.1} parent=0
    _
  %s5 = ssub.s32 1, %s3
  %s6 = scalar_select 0, %s5, %s3
  $region1: #{tpu_custom_call.1} parent=0
    #allocation2 [shape = 'u8[8192]{0}', space=vmem, size = 0x2000, scoped, tag = 'input window, operand 0, single buffered']
    #allocation3 [shape = 's32[1]{0}', space=sflag, size = 0x4, scoped, tag = 'scoped memory for tpu_custom_call.1']
    #allocation4 [shape = 's32[1]{0}', space=sflag, size = 0x4, scoped, tag = 'scoped memory for tpu_custom_call.1']
    #allocation5 [shape = 'u8[159744]{0}', space=vmem, size = 0x27000, scoped, tag = 'input window, operand 1, single buffered']
    #allocation6 [shape = 's32[1]{0}', space=sflag, size = 0x4, scoped, tag = 'scoped memory for tpu_custom_call.1']
    #allocation7 [shape = 'u8[8192]{0}', space=vmem, size = 0x2000, scoped, tag = 'output window, operand 0, single buffered']
    %7 = vsyncpa [#allocation3], 0
    %8 = vsyncpa [#allocation6], 0
    %9 = vsyncpa [#allocation4], 0
    // Predicated region
    $region2: #{tpu_custom_call.1} parent=1 // pred_check
      _
    $region3: #{tpu_custom_call.1} parent=1 // pred_check_branch
      %11 = sbr.rel (0) target = $region5
    $region4: #{tpu_custom_call.1} parent=1 // pred_region
      %s13 = ssub.s32 256, 256
      %14 = vsyncadd [#allocation3], %s13
      %s15 = sshll.u32 [#allocation2], 4
      %s16 = int_to_ptr.vmem [resolvable:$true] %s15
      %21 = dma.hbm_to_vmem [thread:$0]  %s0, 256, %s16, [#allocation3], 128, 128, 8
    $region5: #{tpu_custom_call.1} parent=1 // pred_fallthru
      _
    // Predicated region
    $region6: #{tpu_custom_call.1} parent=1 // pred_check
      _
    $region7: #{tpu_custom_call.1} parent=1 // pred_check_branch
      %23 = sbr.rel (0) target = $region9
    $region8: #{tpu_custom_call.1} parent=1 // pred_region
      %s25 = ssub.s32 4992, 4992
      %26 = vsyncadd [#allocation6], %s25
      %s27 = sshll.u32 [#allocation5], 4
      %s28 = int_to_ptr.vmem [resolvable:$true] %s27
      %33 = dma.hbm_to_vmem [thread:$0]  %s1, 4992, %s28, [#allocation6], 128, 128, 8
    $region9: #{tpu_custom_call.1} parent=1 // pred_fallthru
      _
    // Predicated region
    $region10: #{tpu_custom_call.1} parent=1 // pred_check
      _
    $region11: #{tpu_custom_call.1} parent=1 // pred_check_branch
      %35 = sbr.rel (0) target = $region13
    $region12: #{tpu_custom_call.1} parent=1 // pred_region
      %36 = dma.done [#allocation3], 256
    $region13: #{tpu_custom_call.1} parent=1 // pred_fallthru
      _
    // Predicated region
    $region14: #{tpu_custom_call.1} parent=1 // pred_check
      _
    $region15: #{tpu_custom_call.1} parent=1 // pred_check_branch
      %38 = sbr.rel (0) target = $region17
    $region16: #{tpu_custom_call.1} parent=1 // pred_region
      %39 = dma.done [#allocation6], 4992
    $region17: #{tpu_custom_call.1} parent=1 // pred_fallthru
      _
    %v40 = vld [vmem:[#allocation2] sm:$0xff]
    %v41 = vld [vmem:[#allocation2 + $0x8] sm:$0xff]
    %v42 = vld [vmem:[#allocation5] sm:$0xff]
    %v43 = vld [vmem:[#allocation5 + $0x8] sm:$0xff]
    %v44 = vld [vmem:[#allocation5 + $0x10] sm:$0xff]
    %v45 = vld [vmem:[#allocation5 + $0x18] sm:$0xff]
    %v46 = vld [vmem:[#allocation5 + $0x20] sm:$0xff]
    %v47 = vld [vmem:[#allocation5 + $0x28] sm:$0xff]
    %v48 = vld [vmem:[#allocation5 + $0x30] sm:$0xff]
    %v49 = vld [vmem:[#allocation5 + $0x38] sm:$0xff]
    %v50 = vld [vmem:[#allocation5 + $0x40] sm:$0xff]
    %v51 = vld [vmem:[#allocation5 + $0x48] sm:$0xff]
    %v52 = vld [vmem:[#allocation5 + $0x50] sm:$0xff]
    %v53 = vld [vmem:[#allocation5 + $0x58] sm:$0xff]
    %v54 = vld [vmem:[#allocation5 + $0x60] sm:$0xff]
    %v55 = vld [vmem:[#allocation5 + $0x68] sm:$0xff]
    %v56 = vld [vmem:[#allocation5 + $0x70] sm:$0xff]
    %v57 = vld [vmem:[#allocation5 + $0x78] sm:$0xff]
    %v58 = vld [vmem:[#allocation5 + $0x80] sm:$0xff]
    %v59 = vld [vmem:[#allocation5 + $0x88] sm:$0xff]
    %v60 = vld [vmem:[#allocation5 + $0x90] sm:$0xff]
    %v61 = vld [vmem:[#allocation5 + $0x98] sm:$0xff]
    %v62 = vld [vmem:[#allocation5 + $0xa0] sm:$0xff]
    %v63 = vld [vmem:[#allocation5 + $0xa8] sm:$0xff]
    %v64 = vld [vmem:[#allocation5 + $0xb0] sm:$0xff]
    %v65 = vld [vmem:[#allocation5 + $0xb8] sm:$0xff]
    %v66 = vld [vmem:[#allocation5 + $0xc0] sm:$0xff]
    %v67 = vld [vmem:[#allocation5 + $0xc8] sm:$0xff]
    %v68 = vld [vmem:[#allocation5 + $0xd0] sm:$0xff]
    %v69 = vld [vmem:[#allocation5 + $0xd8] sm:$0xff]
    %v70 = vld [vmem:[#allocation5 + $0xe0] sm:$0xff]
    %v71 = vld [vmem:[#allocation5 + $0xe8] sm:$0xff]
    %v72 = vld [vmem:[#allocation5 + $0xf0] sm:$0xff]
    %v73 = vld [vmem:[#allocation5 + $0xf8] sm:$0xff]
    %v74 = vld [vmem:[#allocation5 + $0x100] sm:$0xff]
    %v75 = vld [vmem:[#allocation5 + $0x108] sm:$0xff]
    %v76 = vld [vmem:[#allocation5 + $0x110] sm:$0xff]
    %v77 = vld [vmem:[#allocation5 + $0x118] sm:$0xff]
    %v78 = vld [vmem:[#allocation5 + $0x120] sm:$0xff]
    %v79 = vld [vmem:[#allocation5 + $0x128] sm:$0xff]
    %v80 = vld [vmem:[#allocation5 + $0x130] sm:$0xff]
    %vm81 = vcmask 261120
    %v82 = vsel %vm81, %v40, 0.0
    %83 = vadd.xlane.f32.xlu0 %v82
    %v84 = vpop.xlane.xlu0 %83
    %v85 = vsel %vm81, %v41, 0.0
    %86 = vadd.xlane.f32.xlu0 %v85
    %v87 = vpop.xlane.xlu0 %86
    %v88 = vrcp.pop 32.0
    %v89 = vmul.f32 %v84, %v88
    %v90 = vmul.f32 %v87, %v88
    %v91 = vmul.f32 %v40, %v40
    %v92 = vmul.f32 %v41, %v41
    %v93 = vsel %vm81, %v91, 0.0
    %94 = vadd.xlane.f32.xlu0 %v93
    %v95 = vpop.xlane.xlu0 %94
    %v96 = vsel %vm81, %v92, 0.0
    %97 = vadd.xlane.f32.xlu0 %v96
    %v98 = vpop.xlane.xlu0 %97
    %v99 = vmul.f32 %v95, %v88
    %v100 = vmul.f32 %v98, %v88
    %v101 = vsub.f32 %v40, %v89
    %v102 = vsub.f32 %v41, %v90
    %v103 = vmul.f32 %v89, %v89
    %v104 = vmul.f32 %v90, %v90
    %v105 = vsub.f32 %v99, %v103
    %v106 = vsub.f32 %v100, %v104
    %v107 = vadd.f32 %v105, 1e-06
    %v108 = vadd.f32 %v106, 1e-06
    %v109 = vrsqrt.pop %v107
    %v110 = vrsqrt.pop %v108
    %v111 = vmul.f32 %v101, %v109
    %v112 = vmul.f32 %v102, %v110
    %v113 = vlaneseq
    %v114 = vshrl.u32 %v113, 7
    %v115 = vsub.s32 0, %v114
    %v116 = vrot.slane %v80, %v115
    %v117 = vmul.f32 %v111, %v116
    %v118 = vmul.f32 %v112, %v116
    %v119 = vlaneseq
    %v120 = vshrl.u32 %v119, 7
    %v121 = vsub.s32 1, %v120
    %v122 = vrot.slane %v80, %v121
    %v123 = vadd.f32 %v117, %v122
    %v124 = vadd.f32 %v118, %v122
    %v125 = vlaneseq
    %v126 = vshrl.u32 %v125, 7
    %v127 = vsub.s32 4, %v126
    %v128 = vrot.slane %v80, %v127
    %v130 = vsel %vm81, %v123, 0
    %v133 = vsel %vm81, %v124, 0
    %135 = vmatprep.subr.mxu0 0.0
    %136 = vmatpush1.msra.mxu0 0.0
    %137 = vmatprep.subr.mxu0 0.0
    %138 = vmatpush1.msra.mxu0 0.0
    %139 = vmatprep.subr.mxu0 0.0
    %140 = vmatpush1.msra.mxu0 0.0
    %141 = vmatprep.subr.mxu0 0.0
    %142 = vmatpush1.msra.mxu0 0.0
    %143 = vmatprep.subr.mxu0 0.0
    %144 = vmatpush1.msra.mxu0 0.0
    %145 = vmatprep.subr.mxu0 0.0
    %146 = vmatpush1.msra.mxu0 0.0
    %147 = vmatprep.subr.mxu0 0.0
    %148 = vmatpush1.msra.mxu0 0.0
    %149 = vmatprep.subr.mxu0 0.0
    %150 = vmatpush1.msra.mxu0 0.0
    %151 = vmatprep.subr.mxu0 0.0
    %152 = vmatpush1.msra.mxu0 0.0
    %153 = vmatprep.subr.mxu0 0.0
    %154 = vmatpush1.msra.mxu0 0.0
    %155 = vmatprep.subr.mxu0 0.0
    %156 = vmatpush1.msra.mxu0 0.0
    %157 = vmatprep.subr.mxu0 0.0
    %158 = vmatpush1.msra.mxu0 0.0
    %159 = vmatprep.subr.mxu0 0.0
    %160 = vmatpush1.msra.mxu0 %v45
    %161 = vmatprep.subr.mxu0 0.0
    %162 = vmatpush1.msra.mxu0 %v44
    %163 = vmatprep.subr.mxu0 0.0
    %164 = vmatpush1.msra.mxu0 %v43
    %165 = vmatprep.subr.mxu0 0.0
    %166 = vmatpush1.msra.mxu0 %v42
    %167 = vmatprep.subr.mxu0 0.0
    %168 = vmatpush2.msra.mxu0 0.0
    %169 = vmatprep.subr.mxu0 0.0
    %170 = vmatpush2.msra.mxu0 0.0
    %171 = vmatprep.subr.mxu0 0.0
    %172 = vmatpush2.msra.mxu0 0.0
    %173 = vmatprep.subr.mxu0 0.0
    %174 = vmatpush2.msra.mxu0 0.0
    %175 = vmatprep.subr.mxu0 0.0
    %176 = vmatpush2.msra.mxu0 0.0
    %177 = vmatprep.subr.mxu0 0.0
    %178 = vmatpush2.msra.mxu0 0.0
    %179 = vmatprep.subr.mxu0 0.0
    %180 = vmatpush2.msra.mxu0 0.0
    %181 = vmatprep.subr.mxu0 0.0
    %182 = vmatpush2.msra.mxu0 0.0
    %183 = vmatprep.subr.mxu0 0.0
    %184 = vmatpush2.msra.mxu0 0.0
    %185 = vmatprep.subr.mxu0 0.0
    %186 = vmatpush2.msra.mxu0 0.0
    %187 = vmatprep.subr.mxu0 0.0
    %188 = vmatpush2.msra.mxu0 0.0
    %189 = vmatprep.subr.mxu0 0.0
    %190 = vmatpush2.msra.mxu0 0.0
    %191 = vmatprep.subr.mxu0 0.0
    %192 = vmatpush2.msra.mxu0 0.0
    %193 = vmatprep.subr.mxu0 0.0
    %194 = vmatpush2.msra.mxu0 0.0
    %195 = vmatprep.subr.mxu0 0.0
    %196 = vmatpush2.msra.mxu0 0.0
    %197 = vmatprep.subr.mxu0 0.0
    %198 = vmatpush2.msra.mxu0 0.0
    %199 = vmatprep.mubr.f32.mxu0 0.0
    %200 = vmatmul.mubr.f32.gmra.mxu0 %v130
    %v201 = vpop.f32.mrf.mxu0
    %v202 = vadd.f32 %v128, %v201
    %v203 = vpop.f32.mrf.mxu0
    %204 = vmatprep.mubr.f32.mxu0 0.0
    %205 = vmatmul.mubr.f32.gmra.mxu0 %v133
    %v206 = vpop.f32.mrf.mxu0
    %v207 = vadd.f32 %v128, %v206
    %v208 = vpop.f32.mrf.mxu0
    %209 = vdwg.mxu0
    %218 = vrot.lane.b32.xlu0 %v70, 32
    %v219 = vpop.permute.xlu0 %218
    %220 = vrot.lane.b32.xlu0 %v71, 32
    %v221 = vpop.permute.xlu0 %220
    %222 = vrot.lane.b32.xlu0 %v72, 32
    %v223 = vpop.permute.xlu0 %222
    %224 = vrot.lane.b32.xlu0 %v73, 32
    %v225 = vpop.permute.xlu0 %224
    %226 = vrot.lane.b32.xlu0 %v74, 32
    %v227 = vpop.permute.xlu0 %226
    %228 = vrot.lane.b32.xlu0 %v75, 32
    %v229 = vpop.permute.xlu0 %228
    %230 = vrot.lane.b32.xlu0 %v76, 32
    %v231 = vpop.permute.xlu0 %230
    %232 = vrot.lane.b32.xlu0 %v77, 32
    %v233 = vpop.permute.xlu0 %232
    %v242 = vmul.f32 %v202, %v219
    %v243 = vmul.f32 %v207, %v221
    %v244 = vmul.f32 %v202, %v223
    %v245 = vmul.f32 %v207, %v225
    %v246 = vmul.f32 %v202, %v227
    %v247 = vmul.f32 %v207, %v229
    %v248 = vmul.f32 %v202, %v231
    %v249 = vmul.f32 %v207, %v233
    %250 = vrot.lane.b32.xlu0 %v70, 64
    %v251 = vpop.permute.xlu0 %250
    %252 = vrot.lane.b32.xlu0 %v71, 64
    %v253 = vpop.permute.xlu0 %252
    %254 = vrot.lane.b32.xlu0 %v72, 64
    %v255 = vpop.permute.xlu0 %254
    %256 = vrot.lane.b32.xlu0 %v73, 64
    %v257 = vpop.permute.xlu0 %256
    %258 = vrot.lane.b32.xlu0 %v74, 64
    %v259 = vpop.permute.xlu0 %258
    %260 = vrot.lane.b32.xlu0 %v75, 64
    %v261 = vpop.permute.xlu0 %260
    %262 = vrot.lane.b32.xlu0 %v76, 64
    %v263 = vpop.permute.xlu0 %262
    %264 = vrot.lane.b32.xlu0 %v77, 64
    %v265 = vpop.permute.xlu0 %264
    %v274 = vmul.f32 %v202, %v251
    %v275 = vmul.f32 %v207, %v253
    %v276 = vmul.f32 %v202, %v255
    %v277 = vmul.f32 %v207, %v257
    %v278 = vmul.f32 %v202, %v259
    %v279 = vmul.f32 %v207, %v261
    %v280 = vmul.f32 %v202, %v263
    %v281 = vmul.f32 %v207, %v265
    %290 = vrot.lane.b32.xlu0 %v242, 96
    %v291 = vpop.permute.xlu0 %290
    %292 = vrot.lane.b32.xlu0 %v243, 96
    %v293 = vpop.permute.xlu0 %292
    %294 = vrot.lane.b32.xlu0 %v244, 96
    %v295 = vpop.permute.xlu0 %294
    %296 = vrot.lane.b32.xlu0 %v245, 96
    %v297 = vpop.permute.xlu0 %296
    %298 = vrot.lane.b32.xlu0 %v246, 96
    %v299 = vpop.permute.xlu0 %298
    %300 = vrot.lane.b32.xlu0 %v247, 96
    %v301 = vpop.permute.xlu0 %300
    %302 = vrot.lane.b32.xlu0 %v248, 96
    %v303 = vpop.permute.xlu0 %302
    %304 = vrot.lane.b32.xlu0 %v249, 96
    %v305 = vpop.permute.xlu0 %304
    %v307 = vsel %vm81, %v202, 0
    %v310 = vsel %vm81, %v207, 0
    %v312 = vsel %vm81, %v291, 0
    %v314 = vsel %vm81, %v293, 0
    %v316 = vsel %vm81, %v295, 0
    %v318 = vsel %vm81, %v297, 0
    %v320 = vsel %vm81, %v299, 0
    %v322 = vsel %vm81, %v301, 0
    %v324 = vsel %vm81, %v303, 0
    %v326 = vsel %vm81, %v305, 0
    %328 = vmatprep.subr.mxu0 0.0
    %329 = vmatpush1.xpose.msra.mxu0 0.0
    %330 = vmatprep.subr.mxu0 0.0
    %331 = vmatpush1.xpose.msra.mxu0 0.0
    %332 = vmatprep.subr.mxu0 0.0
    %333 = vmatpush1.xpose.msra.mxu0 0.0
    %334 = vmatprep.subr.mxu0 0.0
    %335 = vmatpush1.xpose.msra.mxu0 0.0
    %336 = vmatprep.subr.mxu0 0.0
    %337 = vmatpush1.xpose.msra.mxu0 0.0
    %338 = vmatprep.subr.mxu0 0.0
    %339 = vmatpush1.xpose.msra.mxu0 0.0
    %340 = vmatprep.subr.mxu0 0.0
    %341 = vmatpush1.xpose.msra.mxu0 0.0
    %342 = vmatprep.subr.mxu0 0.0
    %343 = vmatpush1.xpose.msra.mxu0 0.0
    %344 = vmatprep.subr.mxu0 0.0
    %345 = vmatpush1.xpose.msra.mxu0 %v326
    %346 = vmatprep.subr.mxu0 0.0
    %347 = vmatpush1.xpose.msra.mxu0 %v324
    %348 = vmatprep.subr.mxu0 0.0
    %349 = vmatpush1.xpose.msra.mxu0 %v322
    %350 = vmatprep.subr.mxu0 0.0
    %351 = vmatpush1.xpose.msra.mxu0 %v320
    %352 = vmatprep.subr.mxu0 0.0
    %353 = vmatpush1.xpose.msra.mxu0 %v318
    %354 = vmatprep.subr.mxu0 0.0
    %355 = vmatpush1.xpose.msra.mxu0 %v316
    %356 = vmatprep.subr.mxu0 0.0
    %357 = vmatpush1.xpose.msra.mxu0 %v314
    %358 = vmatprep.subr.mxu0 0.0
    %359 = vmatpush1.xpose.msra.mxu0 %v312
    %360 = vmatprep.subr.mxu0 0.0
    %361 = vmatpush2.xpose.msra.mxu0 0.0
    %362 = vmatprep.subr.mxu0 0.0
    %363 = vmatpush2.xpose.msra.mxu0 0.0
    %364 = vmatprep.subr.mxu0 0.0
    %365 = vmatpush2.xpose.msra.mxu0 0.0
    %366 = vmatprep.subr.mxu0 0.0
    %367 = vmatpush2.xpose.msra.mxu0 0.0
    %368 = vmatprep.subr.mxu0 0.0
    %369 = vmatpush2.xpose.msra.mxu0 0.0
    %370 = vmatprep.subr.mxu0 0.0
    %371 = vmatpush2.xpose.msra.mxu0 0.0
    %372 = vmatprep.subr.mxu0 0.0
    %373 = vmatpush2.xpose.msra.mxu0 0.0
    %374 = vmatprep.subr.mxu0 0.0
    %375 = vmatpush2.xpose.msra.mxu0 0.0
    %376 = vmatprep.subr.mxu0 0.0
    %377 = vmatpush2.xpose.msra.mxu0 0.0
    %378 = vmatprep.subr.mxu0 0.0
    %379 = vmatpush2.xpose.msra.mxu0 0.0
    %380 = vmatprep.subr.mxu0 0.0
    %381 = vmatpush2.xpose.msra.mxu0 0.0
    %382 = vmatprep.subr.mxu0 0.0
    %383 = vmatpush2.xpose.msra.mxu0 0.0
    %384 = vmatprep.subr.mxu0 0.0
    %385 = vmatpush2.xpose.msra.mxu0 0.0
    %386 = vmatprep.subr.mxu0 0.0
    %387 = vmatpush2.xpose.msra.mxu0 0.0
    %388 = vmatprep.subr.mxu0 0.0
    %389 = vmatpush2.xpose.msra.mxu0 0.0
    %390 = vmatprep.subr.mxu0 0.0
    %391 = vmatpush2.xpose.msra.mxu0 0.0
    %392 = vmatprep.mubr.f32.mxu0 0.0
    %393 = vmatmul.mubr.f32.gmra.mxu0 %v307
    %v394 = vpop.f32.mrf.mxu0
    %v395 = vadd.f32 %v78, %v394
    %v396 = vpop.f32.mrf.mxu0
    %397 = vmatprep.mubr.f32.mxu0 0.0
    %398 = vmatmul.mubr.f32.gmra.mxu0 %v310
    %v399 = vpop.f32.mrf.mxu0
    %v400 = vadd.f32 %v79, %v399
    %v401 = vpop.f32.mrf.mxu0
    %402 = vdwg.mxu0
    %vm403 = vcmask 523264
    %v404 = vsel %vm403, %v395, -inf
    %405 = vmax.xlane.f32.xlu0 %v404
    %v406 = vpop.xlane.xlu0 %405
    %v407 = vsel %vm403, %v400, -inf
    %408 = vmax.xlane.f32.xlu0 %v407
    %v409 = vpop.xlane.xlu0 %408
    %v410 = vsub.f32 %v395, %v406
    %v411 = vsub.f32 %v400, %v409
    %v412 = vmul.f32 %v410, 1.442695
    %v413 = vpow.pop %v412
    %v414 = vmul.f32 %v411, 1.442695
    %v415 = vpow.pop %v414
    %v417 = vsel %vm403, %v413, 0
    %v420 = vsel %vm403, %v415, 0
    %422 = vmatprep.subr.mxu0 0.0
    %423 = vmatpush1.msra.mxu0 0.0
    %424 = vmatprep.subr.mxu0 0.0
    %425 = vmatpush1.msra.mxu0 0.0
    %426 = vmatprep.subr.mxu0 0.0
    %427 = vmatpush1.msra.mxu0 0.0
    %428 = vmatprep.subr.mxu0 0.0
    %429 = vmatpush1.msra.mxu0 0.0
    %430 = vmatprep.subr.mxu0 0.0
    %431 = vmatpush1.msra.mxu0 0.0
    %432 = vmatprep.subr.mxu0 0.0
    %433 = vmatpush1.msra.mxu0 0.0
    %434 = vmatprep.subr.mxu0 0.0
    %435 = vmatpush1.msra.mxu0 0.0
    %436 = vmatprep.subr.mxu0 0.0
    %437 = vmatpush1.msra.mxu0 0.0
    %438 = vmatprep.subr.mxu0 0.0
    %439 = vmatpush1.msra.mxu0 %v69
    %440 = vmatprep.subr.mxu0 0.0
    %441 = vmatpush1.msra.mxu0 %v68
    %442 = vmatprep.subr.mxu0 0.0
    %443 = vmatpush1.msra.mxu0 %v67
    %444 = vmatprep.subr.mxu0 0.0
    %445 = vmatpush1.msra.mxu0 %v66
    %446 = vmatprep.subr.mxu0 0.0
    %447 = vmatpush1.msra.mxu0 %v65
    %448 = vmatprep.subr.mxu0 0.0
    %449 = vmatpush1.msra.mxu0 %v64
    %450 = vmatprep.subr.mxu0 0.0
    %451 = vmatpush1.msra.mxu0 %v63
    %452 = vmatprep.subr.mxu0 0.0
    %453 = vmatpush1.msra.mxu0 %v62
    %454 = vmatprep.subr.mxu0 0.0
    %455 = vmatpush2.msra.mxu0 0.0
    %456 = vmatprep.subr.mxu0 0.0
    %457 = vmatpush2.msra.mxu0 0.0
    %458 = vmatprep.subr.mxu0 0.0
    %459 = vmatpush2.msra.mxu0 0.0
    %460 = vmatprep.subr.mxu0 0.0
    %461 = vmatpush2.msra.mxu0 0.0
    %462 = vmatprep.subr.mxu0 0.0
    %463 = vmatpush2.msra.mxu0 0.0
    %464 = vmatprep.subr.mxu0 0.0
    %465 = vmatpush2.msra.mxu0 0.0
    %466 = vmatprep.subr.mxu0 0.0
    %467 = vmatpush2.msra.mxu0 0.0
    %468 = vmatprep.subr.mxu0 0.0
    %469 = vmatpush2.msra.mxu0 0.0
    %470 = vmatprep.subr.mxu0 0.0
    %471 = vmatpush2.msra.mxu0 0.0
    %472 = vmatprep.subr.mxu0 0.0
    %473 = vmatpush2.msra.mxu0 0.0
    %474 = vmatprep.subr.mxu0 0.0
    %475 = vmatpush2.msra.mxu0 0.0
    %476 = vmatprep.subr.mxu0 0.0
    %477 = vmatpush2.msra.mxu0 0.0
    %478 = vmatprep.subr.mxu0 0.0
    %479 = vmatpush2.msra.mxu0 0.0
    %480 = vmatprep.subr.mxu0 0.0
    %481 = vmatpush2.msra.mxu0 0.0
    %482 = vmatprep.subr.mxu0 0.0
    %483 = vmatpush2.msra.mxu0 0.0
    %484 = vmatprep.subr.mxu0 0.0
    %485 = vmatpush2.msra.mxu0 0.0
    %486 = vmatprep.mubr.f32.mxu0 0.0
    %487 = vmatmul.mubr.f32.gmra.mxu0 %v417
    %v488 = vpop.f32.mrf.mxu0
    %v489 = vadd.f32 0.0, %v488
    %v490 = vpop.f32.mrf.mxu0
    %491 = vmatprep.mubr.f32.mxu0 0.0
    %492 = vmatmul.mubr.f32.gmra.mxu0 %v420
    %v493 = vpop.f32.mrf.mxu0
    %v494 = vadd.f32 0.0, %v493
    %v495 = vpop.f32.mrf.mxu0
    %496 = vdwg.mxu0
    %v497 = vrcp.pop %v489
    %v498 = vmul.f32 %v413, %v497
    %v499 = vrcp.pop %v494
    %v500 = vmul.f32 %v415, %v499
    %509 = vrot.lane.b32.xlu0 %v274, 64
    %v510 = vpop.permute.xlu0 %509
    %511 = vrot.lane.b32.xlu0 %v275, 64
    %v512 = vpop.permute.xlu0 %511
    %513 = vrot.lane.b32.xlu0 %v276, 64
    %v514 = vpop.permute.xlu0 %513
    %515 = vrot.lane.b32.xlu0 %v277, 64
    %v516 = vpop.permute.xlu0 %515
    %517 = vrot.lane.b32.xlu0 %v278, 64
    %v518 = vpop.permute.xlu0 %517
    %519 = vrot.lane.b32.xlu0 %v279, 64
    %v520 = vpop.permute.xlu0 %519
    %521 = vrot.lane.b32.xlu0 %v280, 64
    %v522 = vpop.permute.xlu0 %521
    %523 = vrot.lane.b32.xlu0 %v281, 64
    %v524 = vpop.permute.xlu0 %523
    %v534 = vsel %vm403, %v498, 0
    %v537 = vsel %vm403, %v500, 0
    %539 = vmatprep.subr.mxu0 0.0
    %540 = vmatpush1.msra.mxu0 0.0
    %541 = vmatprep.subr.mxu0 0.0
    %542 = vmatpush1.msra.mxu0 0.0
    %543 = vmatprep.subr.mxu0 0.0
    %544 = vmatpush1.msra.mxu0 0.0
    %545 = vmatprep.subr.mxu0 0.0
    %546 = vmatpush1.msra.mxu0 0.0
    %547 = vmatprep.subr.mxu0 0.0
    %548 = vmatpush1.msra.mxu0 0.0
    %549 = vmatprep.subr.mxu0 0.0
    %550 = vmatpush1.msra.mxu0 0.0
    %551 = vmatprep.subr.mxu0 0.0
    %552 = vmatpush1.msra.mxu0 0.0
    %553 = vmatprep.subr.mxu0 0.0
    %554 = vmatpush1.msra.mxu0 0.0
    %555 = vmatprep.subr.mxu0 0.0
    %556 = vmatpush1.msra.mxu0 %v524
    %557 = vmatprep.subr.mxu0 0.0
    %558 = vmatpush1.msra.mxu0 %v522
    %559 = vmatprep.subr.mxu0 0.0
    %560 = vmatpush1.msra.mxu0 %v520
    %561 = vmatprep.subr.mxu0 0.0
    %562 = vmatpush1.msra.mxu0 %v518
    %563 = vmatprep.subr.mxu0 0.0
    %564 = vmatpush1.msra.mxu0 %v516
    %565 = vmatprep.subr.mxu0 0.0
    %566 = vmatpush1.msra.mxu0 %v514
    %567 = vmatprep.subr.mxu0 0.0
    %568 = vmatpush1.msra.mxu0 %v512
    %569 = vmatprep.subr.mxu0 0.0
    %570 = vmatpush1.msra.mxu0 %v510
    %571 = vmatprep.subr.mxu0 0.0
    %572 = vmatpush2.msra.mxu0 0.0
    %573 = vmatprep.subr.mxu0 0.0
    %574 = vmatpush2.msra.mxu0 0.0
    %575 = vmatprep.subr.mxu0 0.0
    %576 = vmatpush2.msra.mxu0 0.0
    %577 = vmatprep.subr.mxu0 0.0
    %578 = vmatpush2.msra.mxu0 0.0
    %579 = vmatprep.subr.mxu0 0.0
    %580 = vmatpush2.msra.mxu0 0.0
    %581 = vmatprep.subr.mxu0 0.0
    %582 = vmatpush2.msra.mxu0 0.0
    %583 = vmatprep.subr.mxu0 0.0
    %584 = vmatpush2.msra.mxu0 0.0
    %585 = vmatprep.subr.mxu0 0.0
    %586 = vmatpush2.msra.mxu0 0.0
    %587 = vmatprep.subr.mxu0 0.0
    %588 = vmatpush2.msra.mxu0 0.0
    %589 = vmatprep.subr.mxu0 0.0
    %590 = vmatpush2.msra.mxu0 0.0
    %591 = vmatprep.subr.mxu0 0.0
    %592 = vmatpush2.msra.mxu0 0.0
    %593 = vmatprep.subr.mxu0 0.0
    %594 = vmatpush2.msra.mxu0 0.0
    %595 = vmatprep.subr.mxu0 0.0
    %596 = vmatpush2.msra.mxu0 0.0
    %597 = vmatprep.subr.mxu0 0.0
    %598 = vmatpush2.msra.mxu0 0.0
    %599 = vmatprep.subr.mxu0 0.0
    %600 = vmatpush2.msra.mxu0 0.0
    %601 = vmatprep.subr.mxu0 0.0
    %602 = vmatpush2.msra.mxu0 0.0
    %603 = vmatprep.mubr.f32.mxu0 0.0
    %604 = vmatmul.mubr.f32.gmra.mxu0 %v534
    %v605 = vpop.f32.mrf.mxu0
    %v606 = vadd.f32 0.0, %v605
    %v607 = vpop.f32.mrf.mxu0
    %608 = vmatprep.mubr.f32.mxu0 0.0
    %609 = vmatmul.mubr.f32.gmra.mxu0 %v537
    %v610 = vpop.f32.mrf.mxu0
    %v611 = vadd.f32 0.0, %v610
    %v612 = vpop.f32.mrf.mxu0
    %613 = vdwg.mxu0
    %v614 = vlaneseq
    %v615 = vshrl.u32 %v614, 7
    %v616 = vsub.s32 5, %v615
    %v617 = vrot.slane %v80, %v616
    %v619 = vsel %vm81, %v606, 0
    %v622 = vsel %vm81, %v611, 0
    %624 = vmatprep.subr.mxu0 0.0
    %625 = vmatpush1.msra.mxu0 0.0
    %626 = vmatprep.subr.mxu0 0.0
    %627 = vmatpush1.msra.mxu0 0.0
    %628 = vmatprep.subr.mxu0 0.0
    %629 = vmatpush1.msra.mxu0 0.0
    %630 = vmatprep.subr.mxu0 0.0
    %631 = vmatpush1.msra.mxu0 0.0
    %632 = vmatprep.subr.mxu0 0.0
    %633 = vmatpush1.msra.mxu0 0.0
    %634 = vmatprep.subr.mxu0 0.0
    %635 = vmatpush1.msra.mxu0 0.0
    %636 = vmatprep.subr.mxu0 0.0
    %637 = vmatpush1.msra.mxu0 0.0
    %638 = vmatprep.subr.mxu0 0.0
    %639 = vmatpush1.msra.mxu0 0.0
    %640 = vmatprep.subr.mxu0 0.0
    %641 = vmatpush1.msra.mxu0 0.0
    %642 = vmatprep.subr.mxu0 0.0
    %643 = vmatpush1.msra.mxu0 0.0
    %644 = vmatprep.subr.mxu0 0.0
    %645 = vmatpush1.msra.mxu0 0.0
    %646 = vmatprep.subr.mxu0 0.0
    %647 = vmatpush1.msra.mxu0 0.0
    %648 = vmatprep.subr.mxu0 0.0
    %649 = vmatpush1.msra.mxu0 %v49
    %650 = vmatprep.subr.mxu0 0.0
    %651 = vmatpush1.msra.mxu0 %v48
    %652 = vmatprep.subr.mxu0 0.0
    %653 = vmatpush1.msra.mxu0 %v47
    %654 = vmatprep.subr.mxu0 0.0
    %655 = vmatpush1.msra.mxu0 %v46
    %656 = vmatprep.subr.mxu0 0.0
    %657 = vmatpush2.msra.mxu0 0.0
    %658 = vmatprep.subr.mxu0 0.0
    %659 = vmatpush2.msra.mxu0 0.0
    %660 = vmatprep.subr.mxu0 0.0
    %661 = vmatpush2.msra.mxu0 0.0
    %662 = vmatprep.subr.mxu0 0.0
    %663 = vmatpush2.msra.mxu0 0.0
    %664 = vmatprep.subr.mxu0 0.0
    %665 = vmatpush2.msra.mxu0 0.0
    %666 = vmatprep.subr.mxu0 0.0
    %667 = vmatpush2.msra.mxu0 0.0
    %668 = vmatprep.subr.mxu0 0.0
    %669 = vmatpush2.msra.mxu0 0.0
    %670 = vmatprep.subr.mxu0 0.0
    %671 = vmatpush2.msra.mxu0 0.0
    %672 = vmatprep.subr.mxu0 0.0
    %673 = vmatpush2.msra.mxu0 0.0
    %674 = vmatprep.subr.mxu0 0.0
    %675 = vmatpush2.msra.mxu0 0.0
    %676 = vmatprep.subr.mxu0 0.0
    %677 = vmatpush2.msra.mxu0 0.0
    %678 = vmatprep.subr.mxu0 0.0
    %679 = vmatpush2.msra.mxu0 0.0
    %680 = vmatprep.subr.mxu0 0.0
    %681 = vmatpush2.msra.mxu0 0.0
    %682 = vmatprep.subr.mxu0 0.0
    %683 = vmatpush2.msra.mxu0 0.0
    %684 = vmatprep.subr.mxu0 0.0
    %685 = vmatpush2.msra.mxu0 0.0
    %686 = vmatprep.subr.mxu0 0.0
    %687 = vmatpush2.msra.mxu0 0.0
    %688 = vmatprep.mubr.f32.mxu0 0.0
    %689 = vmatmul.mubr.f32.gmra.mxu0 %v619
    %v690 = vpop.f32.mrf.mxu0
    %v691 = vadd.f32 %v617, %v690
    %v692 = vpop.f32.mrf.mxu0
    %693 = vmatprep.mubr.f32.mxu0 0.0
    %694 = vmatmul.mubr.f32.gmra.mxu0 %v622
    %v695 = vpop.f32.mrf.mxu0
    %v696 = vadd.f32 %v617, %v695
    %v697 = vpop.f32.mrf.mxu0
    %698 = vdwg.mxu0
    %v699 = vadd.f32 %v691, %v40
    %v700 = vadd.f32 %v696, %v41
    %v701 = vsel %vm81, %v699, 0.0
    %702 = vadd.xlane.f32.xlu0 %v701
    %v703 = vpop.xlane.xlu0 %702
    %v704 = vsel %vm81, %v700, 0.0
    %705 = vadd.xlane.f32.xlu0 %v704
    %v706 = vpop.xlane.xlu0 %705
    %v707 = vmul.f32 %v703, %v88
    %v708 = vmul.f32 %v706, %v88
    %v709 = vmul.f32 %v699, %v699
    %v710 = vmul.f32 %v700, %v700
    %v711 = vsel %vm81, %v709, 0.0
    %712 = vadd.xlane.f32.xlu0 %v711
    %v713 = vpop.xlane.xlu0 %712
    %v714 = vsel %vm81, %v710, 0.0
    %715 = vadd.xlane.f32.xlu0 %v714
    %v716 = vpop.xlane.xlu0 %715
    %v717 = vmul.f32 %v713, %v88
    %v718 = vmul.f32 %v716, %v88
    %v719 = vsub.f32 %v699, %v707
    %v720 = vsub.f32 %v700, %v708
    %v721 = vmul.f32 %v707, %v707
    %v722 = vmul.f32 %v708, %v708
    %v723 = vsub.f32 %v717, %v721
    %v724 = vsub.f32 %v718, %v722
    %v725 = vadd.f32 %v723, 1e-06
    %v726 = vadd.f32 %v724, 1e-06
    %v727 = vrsqrt.pop %v725
    %v728 = vrsqrt.pop %v726
    %v729 = vmul.f32 %v719, %v727
    %v730 = vmul.f32 %v720, %v728
    %v731 = vlaneseq
    %v732 = vshrl.u32 %v731, 7
    %v733 = vsub.s32 2, %v732
    %v734 = vrot.slane %v80, %v733
    %v735 = vmul.f32 %v729, %v734
    %v736 = vmul.f32 %v730, %v734
    %v737 = vlaneseq
    %v738 = vshrl.u32 %v737, 7
    %v739 = vsub.s32 3, %v738
    %v740 = vrot.slane %v80, %v739
    %v741 = vadd.f32 %v735, %v740
    %v742 = vadd.f32 %v736, %v740
    %v743 = vlaneseq
    %v744 = vshrl.u32 %v743, 7
    %v745 = vsub.s32 6, %v744
    %v746 = vrot.slane %v80, %v745
    %v748 = vsel %vm81, %v741, 0
    %v751 = vsel %vm81, %v742, 0
    %753 = vmatprep.subr.mxu0 0.0
    %754 = vmatpush1.msra.mxu0 0.0
    %755 = vmatprep.subr.mxu0 0.0
    %756 = vmatpush1.msra.mxu0 0.0
    %757 = vmatprep.subr.mxu0 0.0
    %758 = vmatpush1.msra.mxu0 0.0
    %759 = vmatprep.subr.mxu0 0.0
    %760 = vmatpush1.msra.mxu0 0.0
    %761 = vmatprep.subr.mxu0 0.0
    %762 = vmatpush1.msra.mxu0 0.0
    %763 = vmatprep.subr.mxu0 0.0
    %764 = vmatpush1.msra.mxu0 0.0
    %765 = vmatprep.subr.mxu0 0.0
    %766 = vmatpush1.msra.mxu0 0.0
    %767 = vmatprep.subr.mxu0 0.0
    %768 = vmatpush1.msra.mxu0 0.0
    %769 = vmatprep.subr.mxu0 0.0
    %770 = vmatpush1.msra.mxu0 0.0
    %771 = vmatprep.subr.mxu0 0.0
    %772 = vmatpush1.msra.mxu0 0.0
    %773 = vmatprep.subr.mxu0 0.0
    %774 = vmatpush1.msra.mxu0 0.0
    %775 = vmatprep.subr.mxu0 0.0
    %776 = vmatpush1.msra.mxu0 0.0
    %777 = vmatprep.subr.mxu0 0.0
    %778 = vmatpush1.msra.mxu0 %v53
    %779 = vmatprep.subr.mxu0 0.0
    %780 = vmatpush1.msra.mxu0 %v52
    %781 = vmatprep.subr.mxu0 0.0
    %782 = vmatpush1.msra.mxu0 %v51
    %783 = vmatprep.subr.mxu0 0.0
    %784 = vmatpush1.msra.mxu0 %v50
    %785 = vmatprep.subr.mxu0 0.0
    %786 = vmatpush2.msra.mxu0 0.0
    %787 = vmatprep.subr.mxu0 0.0
    %788 = vmatpush2.msra.mxu0 0.0
    %789 = vmatprep.subr.mxu0 0.0
    %790 = vmatpush2.msra.mxu0 0.0
    %791 = vmatprep.subr.mxu0 0.0
    %792 = vmatpush2.msra.mxu0 0.0
    %793 = vmatprep.subr.mxu0 0.0
    %794 = vmatpush2.msra.mxu0 0.0
    %795 = vmatprep.subr.mxu0 0.0
    %796 = vmatpush2.msra.mxu0 0.0
    %797 = vmatprep.subr.mxu0 0.0
    %798 = vmatpush2.msra.mxu0 0.0
    %799 = vmatprep.subr.mxu0 0.0
    %800 = vmatpush2.msra.mxu0 0.0
    %801 = vmatprep.subr.mxu0 0.0
    %802 = vmatpush2.msra.mxu0 0.0
    %803 = vmatprep.subr.mxu0 0.0
    %804 = vmatpush2.msra.mxu0 0.0
    %805 = vmatprep.subr.mxu0 0.0
    %806 = vmatpush2.msra.mxu0 0.0
    %807 = vmatprep.subr.mxu0 0.0
    %808 = vmatpush2.msra.mxu0 0.0
    %809 = vmatprep.subr.mxu0 0.0
    %810 = vmatpush2.msra.mxu0 0.0
    %811 = vmatprep.subr.mxu0 0.0
    %812 = vmatpush2.msra.mxu0 0.0
    %813 = vmatprep.subr.mxu0 0.0
    %814 = vmatpush2.msra.mxu0 0.0
    %815 = vmatprep.subr.mxu0 0.0
    %816 = vmatpush2.msra.mxu0 0.0
    %817 = vmatprep.mubr.f32.mxu0 0.0
    %818 = vmatmul.mubr.f32.gmra.mxu0 %v748
    %v819 = vpop.f32.mrf.mxu0
    %v820 = vadd.f32 %v746, %v819
    %v821 = vpop.f32.mrf.mxu0
    %822 = vmatprep.mubr.f32.mxu0 0.0
    %823 = vmatmul.mubr.f32.gmra.mxu0 %v751
    %v824 = vpop.f32.mrf.mxu0
    %v825 = vadd.f32 %v746, %v824
    %v826 = vpop.f32.mrf.mxu0
    %827 = vdwg.mxu0
    %v828 = vmul.f32 %v820, 0.5
    %v829 = vmul.f32 %v825, 0.5
    %v830 = vmul.f32 %v820, 0.70710677
    %v831 = vmul.f32 %v825, 0.70710677
    %v832 = verf.f32.pop %v830
    %v833 = verf.f32.pop %v831
    %v834 = vadd.f32 %v832, 1.0
    %v835 = vadd.f32 %v833, 1.0
    %v836 = vmul.f32 %v828, %v834
    %v837 = vmul.f32 %v829, %v835
    %v838 = vlaneseq
    %v839 = vshrl.u32 %v838, 7
    %v840 = vsub.s32 7, %v839
    %v841 = vrot.slane %v80, %v840
    %v843 = vsel %vm403, %v836, 0
    %v846 = vsel %vm403, %v837, 0
    %848 = vmatprep.subr.mxu0 0.0
    %849 = vmatpush1.msra.mxu0 0.0
    %850 = vmatprep.subr.mxu0 0.0
    %851 = vmatpush1.msra.mxu0 0.0
    %852 = vmatprep.subr.mxu0 0.0
    %853 = vmatpush1.msra.mxu0 0.0
    %854 = vmatprep.subr.mxu0 0.0
    %855 = vmatpush1.msra.mxu0 0.0
    %856 = vmatprep.subr.mxu0 0.0
    %857 = vmatpush1.msra.mxu0 0.0
    %858 = vmatprep.subr.mxu0 0.0
    %859 = vmatpush1.msra.mxu0 0.0
    %860 = vmatprep.subr.mxu0 0.0
    %861 = vmatpush1.msra.mxu0 0.0
    %862 = vmatprep.subr.mxu0 0.0
    %863 = vmatpush1.msra.mxu0 0.0
    %864 = vmatprep.subr.mxu0 0.0
    %865 = vmatpush1.msra.mxu0 %v61
    %866 = vmatprep.subr.mxu0 0.0
    %867 = vmatpush1.msra.mxu0 %v60
    %868 = vmatprep.subr.mxu0 0.0
    %869 = vmatpush1.msra.mxu0 %v59
    %870 = vmatprep.subr.mxu0 0.0
    %871 = vmatpush1.msra.mxu0 %v58
    %872 = vmatprep.subr.mxu0 0.0
    %873 = vmatpush1.msra.mxu0 %v57
    %874 = vmatprep.subr.mxu0 0.0
    %875 = vmatpush1.msra.mxu0 %v56
    %876 = vmatprep.subr.mxu0 0.0
    %877 = vmatpush1.msra.mxu0 %v55
    %878 = vmatprep.subr.mxu0 0.0
    %879 = vmatpush1.msra.mxu0 %v54
    %880 = vmatprep.subr.mxu0 0.0
    %881 = vmatpush2.msra.mxu0 0.0
    %882 = vmatprep.subr.mxu0 0.0
    %883 = vmatpush2.msra.mxu0 0.0
    %884 = vmatprep.subr.mxu0 0.0
    %885 = vmatpush2.msra.mxu0 0.0
    %886 = vmatprep.subr.mxu0 0.0
    %887 = vmatpush2.msra.mxu0 0.0
    %888 = vmatprep.subr.mxu0 0.0
    %889 = vmatpush2.msra.mxu0 0.0
    %890 = vmatprep.subr.mxu0 0.0
    %891 = vmatpush2.msra.mxu0 0.0
    %892 = vmatprep.subr.mxu0 0.0
    %893 = vmatpush2.msra.mxu0 0.0
    %894 = vmatprep.subr.mxu0 0.0
    %895 = vmatpush2.msra.mxu0 0.0
    %896 = vmatprep.subr.mxu0 0.0
    %897 = vmatpush2.msra.mxu0 0.0
    %898 = vmatprep.subr.mxu0 0.0
    %899 = vmatpush2.msra.mxu0 0.0
    %900 = vmatprep.subr.mxu0 0.0
    %901 = vmatpush2.msra.mxu0 0.0
    %902 = vmatprep.subr.mxu0 0.0
    %903 = vmatpush2.msra.mxu0 0.0
    %904 = vmatprep.subr.mxu0 0.0
    %905 = vmatpush2.msra.mxu0 0.0
    %906 = vmatprep.subr.mxu0 0.0
    %907 = vmatpush2.msra.mxu0 0.0
    %908 = vmatprep.subr.mxu0 0.0
    %909 = vmatpush2.msra.mxu0 0.0
    %910 = vmatprep.subr.mxu0 0.0
    %911 = vmatpush2.msra.mxu0 0.0
    %912 = vmatprep.mubr.f32.mxu0 0.0
    %913 = vmatmul.mubr.f32.gmra.mxu0 %v843
    %v914 = vpop.f32.mrf.mxu0
    %v915 = vadd.f32 %v841, %v914
    %v916 = vpop.f32.mrf.mxu0
    %917 = vmatprep.mubr.f32.mxu0 0.0
    %918 = vmatmul.mubr.f32.gmra.mxu0 %v846
    %v919 = vpop.f32.mrf.mxu0
    %v920 = vadd.f32 %v841, %v919
    %v921 = vpop.f32.mrf.mxu0
    %922 = vdwg.mxu0
    %v923 = vadd.f32 %v699, %v915
    %v924 = vadd.f32 %v700, %v920
    %925 = vst.msk [vmem:[#allocation7] sm:$0xff] %vm81, %v923
    %926 = vst.msk [vmem:[#allocation7 + $0x8] sm:$0xff] %vm81, %v924
    // Predicated region
    $region18: #{tpu_custom_call.1} parent=1 // pred_check
      _
    $region19: #{tpu_custom_call.1} parent=1 // pred_check_branch
      %928 = sbr.rel (0) target = $region21
    $region20: #{tpu_custom_call.1} parent=1 // pred_region
      %s930 = ssub.s32 256, 256
      %931 = vsyncadd [#allocation4], %s930
      %s932 = sshll.u32 [#allocation7], 4
      %s933 = int_to_ptr.vmem [resolvable:$true] %s932
      %938 = dma.vmem_to_hbm [thread:$0]  %s933, 256, %s2, [#allocation4], 128, 128, 8
    $region21: #{tpu_custom_call.1} parent=1 // pred_fallthru
      _
    // Predicated region
    $region22: #{tpu_custom_call.1} parent=1 // pred_check
      _
    $region23: #{tpu_custom_call.1} parent=1 // pred_check_branch
      %940 = sbr.rel (0) target = $region25
    $region24: #{tpu_custom_call.1} parent=1 // pred_region
      %941 = dma.done [#allocation4], 256
    $region25: #{tpu_custom_call.1} parent=1 // pred_fallthru
      _
    %942 = vsyncpa [#allocation3], 1
    %943 = vsyncpa [#allocation6], 1
    %944 = vsyncpa [#allocation4], 1

</llo_original>
